<compile_context>
chip_gen: v5e
topology: v5e:2x2
jax: 0.10.0
libtpu: 0.0.40
codegen_flags: <defaults>
</compile_context>

<pallas_src>
import functools

import jax
import jax.numpy as jnp
from jax.experimental import pallas as pl
from jax.experimental.pallas import tpu as pltpu


def _round_up(x, m):
    return ((x + m - 1) // m) * m


# ---------------------------------------------------------------------------
# Kernel: one (TM, C) tile of logits + (TM, 1) tile of targets per grid step,
# writing (TM, 1) per-row smoothed losses (masked for the ragged last block).
# ---------------------------------------------------------------------------
def _ls_loss_kernel(pred_ref, tgt_ref, out_ref, *, n_rows, tm, n_cls, conf, off):
    i = pl.program_id(0)

    x = pred_ref[...].astype(jnp.float32)                    # (TM, C)
    tgt = tgt_ref[...]                                        # (TM, 1) int32

    # Fused class-axis reductions (no (TM, C) log-softmax temporary kept):
    m = jnp.max(x, axis=-1, keepdims=True)                    # (TM, 1)
    sum_exp = jnp.sum(jnp.exp(x - m), axis=-1, keepdims=True)  # (TM, 1)
    lse = jnp.log(sum_exp)                                    # (TM, 1)
    sum_x = jnp.sum(x, axis=-1, keepdims=True)                # (TM, 1)

    # Gather x at the target class via iota one-hot compare (no scatter).
    col = jax.lax.broadcasted_iota(jnp.int32, x.shape, 1)     # (TM, C)
    x_t = jnp.sum(jnp.where(col == tgt, x, 0.0),
                  axis=-1, keepdims=True)                     # (TM, 1)

    #   logp[c]    = x[c] - m - lse
    #   logp[t]    = x_t - m - lse
    #   sum_c logp = sum_x - C * (m + lse)
    logp_t = x_t - m - lse
    sum_logp = sum_x - n_cls * (m + lse)

    loss_row = -(conf - off) * logp_t - off * sum_logp        # (TM, 1)

    # Mask rows of the ragged last block (edge-block reads are undefined).
    row = i * tm + jax.lax.broadcasted_iota(jnp.int32, (tm, 1), 0)
    loss_row = jnp.where(row < n_rows, loss_row, 0.0)

    out_ref[...] = loss_row


def label_smoothing_loss(pred, target, smoothing=0.1, block_rows=1024):
    """Forward of LabelSmoothingLoss.

    pred:   (N, C) float logits (not softmaxed)
    target: (N,)   integer class indices
    returns scalar float32 loss (mean over batch)
    """
    N, C = pred.shape
    confidence = 1.0 - smoothing
    off = (smoothing / (C - 1)) if C > 1 else 0.0

    # Row tile: multiple of 8 (f32 sublanes).  Budget ~12 MiB for the
    # double-buffered input tile plus the f32 in-kernel working set so the
    # same tiling fits comfortably on v5e/v6e (128 MiB) and v7x (64 MiB).
    in_itemsize = jnp.dtype(pred.dtype).itemsize
    budget = 12 * 1024 * 1024
    per_row = C * (2 * in_itemsize + 4)
    tm = min(budget // per_row, int(block_rows), _round_up(N, 8))
    TM = max(8, (tm // 8) * 8)

    num_blocks = pl.cdiv(N, TM)
    tgt2d = target.astype(jnp.int32).reshape(N, 1)

    kernel = functools.partial(
        _ls_loss_kernel, n_rows=N, tm=TM, n_cls=C, conf=confidence, off=off
    )

    per_row_loss = pl.pallas_call(
        kernel,
        out_shape=jax.ShapeDtypeStruct((num_blocks * TM, 1), jnp.float32),
        grid_spec=pltpu.PrefetchScalarGridSpec(
            num_scalar_prefetch=0,
            grid=(num_blocks,),
            in_specs=[
                pl.BlockSpec((TM, C), lambda i: (i, 0)),   # logits tile
                pl.BlockSpec((TM, 1), lambda i: (i, 0)),   # target tile
            ],
            out_specs=pl.BlockSpec((TM, 1), lambda i: (i, 0)),  # per-row loss
        ),
        compiler_params=pltpu.CompilerParams(
            dimension_semantics=("parallel",),   # independent blocks (megacore)
            vmem_limit_bytes=32 * 1024 * 1024,
        ),
        cost_estimate=pl.CostEstimate(
            flops=6 * N * C,
            transcendentals=N * C,
            bytes_accessed=N * C * in_itemsize + N * 4 + num_blocks * TM * 4,
        ),
    )(pred, tgt2d)

    # Tiny final reduction + mean scaling in the wrapper (padded rows are 0).
    return jnp.sum(per_row_loss) / N


# ---------------------------------------------------------------------------
# Pure-JAX reference mirroring the PyTorch module exactly.
# ---------------------------------------------------------------------------
def _reference(pred, target, smoothing):
    N, C = pred.shape
    conf = 1.0 - smoothing
    logp = jax.nn.log_softmax(pred, axis=-1)
    true_dist = jnp.full_like(pred, smoothing / (C - 1))
    true_dist = true_dist.at[jnp.arange(N), target].set(conf)
    return jnp.mean(jnp.sum(-true_dist * logp, axis=-1))


if __name__ == "__main__":
    # Small shapes consistent with the module: batch of logits over C classes.
    N, C = 10, 32          # N=10 exercises the ragged-block masking path
    smoothing = 0.1

    key = jax.random.PRNGKey(0)
    kp, kt = jax.random.split(key)
    pred = jax.random.normal(kp, (N, C), dtype=jnp.float32)
    target = jax.random.randint(kt, (N,), 0, C, dtype=jnp.int32)

    loss = label_smoothing_loss(pred, target, smoothing=smoothing)
    loss = jax.block_until_ready(loss)

    ref = _reference(pred, target, smoothing)
    assert loss.shape == ()
    assert jnp.allclose(loss, ref, atol=1e-5, rtol=1e-5), (loss, ref)

    print("KERNEL_OK")
</pallas_src>

<mosaic_0001>
module attributes {stable_mosaic.version = 11 : i64} {
  func.func @_ls_loss_kernel(%arg0: i32, %arg1: memref<16x32xf32, #tpu.memory_space<vmem>>, %arg2: memref<16x1xi32, #tpu.memory_space<vmem>>, %arg3: memref<16x1xf32, #tpu.memory_space<vmem>>) attributes {dimension_semantics = [#tpu.dimension_semantics<parallel>], iteration_bounds = array<i64: 1>, scalar_prefetch = 0 : i64, scratch_operands = 0 : i64, tpu.core_type = #tpu.core_type<tc>, window_params = [{transform_indices = @transform_0, window_bounds = array<i64: 16, 32>}, {transform_indices = @transform_1, window_bounds = array<i64: 16, 1>}, {transform_indices = @transform_2, window_bounds = array<i64: 16, 1>}]} {
    %c0 = arith.constant 0 : index
    %c0_0 = arith.constant 0 : index
    %0 = vector.load %arg1[%c0, %c0_0] : memref<16x32xf32, #tpu.memory_space<vmem>>, vector<16x32xf32>
    %c0_1 = arith.constant 0 : index
    %c0_2 = arith.constant 0 : index
    %1 = vector.load %arg2[%c0_1, %c0_2] : memref<16x1xi32, #tpu.memory_space<vmem>>, vector<16x1xi32>
    %cst = arith.constant dense<0xFF800000> : vector<16xf32>
    %2 = vector.multi_reduction <maximumf>, %0, %cst [1] : vector<16x32xf32> to vector<16xf32>
    %3 = vector.shape_cast %2 : vector<16xf32> to vector<16x1xf32>
    %4 = vector.broadcast %3 : vector<16x1xf32> to vector<16x32xf32>
    %5 = arith.subf %0, %4 : vector<16x32xf32>
    %6 = math.exp %5 : vector<16x32xf32>
    %cst_3 = arith.constant dense<0.000000e+00> : vector<16xf32>
    %7 = vector.multi_reduction <add>, %6, %cst_3 [1] : vector<16x32xf32> to vector<16xf32>
    %8 = vector.shape_cast %7 : vector<16xf32> to vector<16x1xf32>
    %9 = math.log %8 : vector<16x1xf32>
    %cst_4 = arith.constant dense<0.000000e+00> : vector<16xf32>
    %10 = vector.multi_reduction <add>, %0, %cst_4 [1] : vector<16x32xf32> to vector<16xf32>
    %11 = vector.shape_cast %10 : vector<16xf32> to vector<16x1xf32>
    %12 = tpu.iota {dimensions = array<i32: 1>} : vector<16x32xi32>
    %13 = vector.broadcast %1 : vector<16x1xi32> to vector<16x32xi32>
    %14 = arith.cmpi eq, %12, %13 : vector<16x32xi32>
    %cst_5 = arith.constant 0.000000e+00 : f32
    %15 = vector.broadcast %cst_5 : f32 to vector<16x32xf32>
    %16 = arith.select %14, %0, %15 : vector<16x32xi1>, vector<16x32xf32>
    %cst_6 = arith.constant dense<0.000000e+00> : vector<16xf32>
    %17 = vector.multi_reduction <add>, %16, %cst_6 [1] : vector<16x32xf32> to vector<16xf32>
    %18 = vector.shape_cast %17 : vector<16xf32> to vector<16x1xf32>
    %19 = arith.subf %18, %3 : vector<16x1xf32>
    %20 = arith.subf %19, %9 : vector<16x1xf32>
    %21 = arith.addf %3, %9 : vector<16x1xf32>
    %cst_7 = arith.constant 3.200000e+01 : f32
    %22 = vector.broadcast %cst_7 : f32 to vector<16x1xf32>
    %23 = arith.mulf %22, %21 : vector<16x1xf32>
    %24 = arith.subf %11, %23 : vector<16x1xf32>
    %cst_8 = arith.constant -0.896774172 : f32
    %25 = vector.broadcast %cst_8 : f32 to vector<16x1xf32>
    %26 = arith.mulf %25, %20 : vector<16x1xf32>
    %cst_9 = arith.constant 0.0032258064 : f32
    %27 = vector.broadcast %cst_9 : f32 to vector<16x1xf32>
    %28 = arith.mulf %27, %24 : vector<16x1xf32>
    %29 = arith.subf %26, %28 : vector<16x1xf32>
    %c16_i32 = arith.constant 16 : i32
    %30 = arith.muli %arg0, %c16_i32 : i32
    %31 = tpu.iota {dimensions = array<i32: 0>} : vector<16x1xi32>
    %32 = vector.broadcast %30 : i32 to vector<16x1xi32>
    %33 = arith.addi %32, %31 : vector<16x1xi32>
    %c10_i32 = arith.constant 10 : i32
    %34 = vector.broadcast %c10_i32 : i32 to vector<16x1xi32>
    %35 = arith.cmpi slt, %33, %34 : vector<16x1xi32>
    %cst_10 = arith.constant 0.000000e+00 : f32
    %36 = vector.broadcast %cst_10 : f32 to vector<16x1xf32>
    %37 = arith.select %35, %29, %36 : vector<16x1xi1>, vector<16x1xf32>
    %c0_11 = arith.constant 0 : index
    %c0_12 = arith.constant 0 : index
    %38 = vector.load %arg3[%c0_11, %c0_12] : memref<16x1xf32, #tpu.memory_space<vmem>>, vector<16x1xf32>
    tpu.vector_store %arg3[%c0_11, %c0_12], %37 {strides = array<i32>} : memref<16x1xf32, #tpu.memory_space<vmem>>, vector<16x1xf32>,
    return
  }
  func.func @transform_0(%arg0: i32) -> (i32, i32) {
    %c0_i32 = arith.constant 0 : i32
    %c0_i32_0 = arith.constant 0 : i32
    return %arg0, %c0_i32 : i32, i32
  }
  func.func @transform_1(%arg0: i32) -> (i32, i32) {
    %c0_i32 = arith.constant 0 : i32
    %c0_i32_0 = arith.constant 0 : i32
    return %arg0, %c0_i32 : i32, i32
  }
  func.func @transform_2(%arg0: i32) -> (i32, i32) {
    %c0_i32 = arith.constant 0 : i32
    %c0_i32_0 = arith.constant 0 : i32
    return %arg0, %c0_i32 : i32, i32
  }
}

</mosaic_0001>

<llo_original>
// kernel: tpu_custom_call.1
$region0: #{tpu_custom_call.1}
  #allocation0 [shape = 'u32[]', space=smem, size = 0x4, offset = 0x4, fixed_abs, tag = 'smem constant byte address 0x4 - core index']
  #allocation1 [shape = 'u32[72,128]{1,0:T(1,128)}', space=vmem, size = 0x9000, scoped, tag = 'internal scratch']
  %s0 = inlined_call_operand.vmem [shape: f32[10,32], index: 0, kind: input, shape index: {}]
  %s1 = inlined_call_operand.vmem [shape: s32[10,1], index: 1, kind: input, shape index: {}]
  %s2 = inlined_call_operand.vmem [shape: f32[16,1], index: 2, kind: output, shape index: {}]
  %s3 = sld [smem:[#allocation0]]
  $region18: #{tpu_custom_call.1} parent=0
    _
  %s5 = ssub.s32 1, %s3
  %s6 = scalar_select 0, %s5, %s3
  // Predicated region
  $region2: #{tpu_custom_call.1} parent=0 // pred_check
    _
  $region3: #{tpu_custom_call.1} parent=0 // pred_check_branch
    %8 = sbr.rel (0) target = $region5
  $region4: #{tpu_custom_call.1} parent=0 // pred_region
    _
  $region5: #{tpu_custom_call.1} parent=0 // pred_fallthru
    _
  // Predicated region
  $region6: #{tpu_custom_call.1} parent=0 // pred_check
    _
  $region7: #{tpu_custom_call.1} parent=0 // pred_check_branch
    %10 = sbr.rel (0) target = $region9
  $region8: #{tpu_custom_call.1} parent=0 // pred_region
    _
  $region9: #{tpu_custom_call.1} parent=0 // pred_fallthru
    _
  %v11 = vld [vmem:[%s0] sm:$0xff]
  %v12 = vld [vmem:[%s0 + $0x8] sm:$0xff]
  %v13 = vld [vmem:[%s1] sm:$0xff]
  %v14 = vld [vmem:[%s1 + $0x8] sm:$0xff]
  %vm15 = vcmask 261120
  %v16 = vsel %vm15, %v11, -inf
  %17 = vmax.xlane.f32.xlu0 %v16
  %v18 = vpop.xlane.xlu0 %17
  %v19 = vsel %vm15, %v12, -inf
  %20 = vmax.xlane.f32.xlu0 %v19
  %v21 = vpop.xlane.xlu0 %20
  %v22 = vsub.f32 %v11, %v18
  %v23 = vsub.f32 %v12, %v21
  %v24 = vmul.f32 %v22, 1.442695
  %v25 = vpow.pop %v24
  %v26 = vmul.f32 %v23, 1.442695
  %v27 = vpow.pop %v26
  %v28 = vsel %vm15, %v25, 0.0
  %29 = vadd.xlane.f32.xlu0 %v28
  %v30 = vpop.xlane.xlu0 %29
  %v31 = vsel %vm15, %v27, 0.0
  %32 = vadd.xlane.f32.xlu0 %v31
  %v33 = vpop.xlane.xlu0 %32
  %v34 = vlog2.pop %v30
  %v35 = vmul.f32 %v34, 0.6931472
  %v36 = vlog2.pop %v33
  %v37 = vmul.f32 %v36, 0.6931472
  %v38 = vsel %vm15, %v11, 0.0
  %39 = vadd.xlane.f32.xlu0 %v38
  %v40 = vpop.xlane.xlu0 %39
  %v41 = vsel %vm15, %v12, 0.0
  %42 = vadd.xlane.f32.xlu0 %v41
  %v43 = vpop.xlane.xlu0 %42
  %v44 = vlaneseq
  %v45 = vand.u32 %v44, 127
  %46 = vset.pattern.permute.xlu0 0
  %47 = vperm.xlu0 %46, %v13
  %v48 = vpop.permute.xlu0 %47
  %49 = vset.pattern.permute.xlu0 0
  %50 = vperm.xlu0 %49, %v14
  %v51 = vpop.permute.xlu0 %50
  %vm52 = vcmp.eq.s32.totalorder %v45, %v48
  %vm53 = vcmp.eq.s32.totalorder %v45, %v51
  %v54 = vsel %vm52, %v11, 0.0
  %v55 = vsel %vm53, %v12, 0.0
  %v56 = vsel %vm15, %v54, 0.0
  %57 = vadd.xlane.f32.xlu0 %v56
  %v58 = vpop.xlane.xlu0 %57
  %v59 = vsel %vm15, %v55, 0.0
  %60 = vadd.xlane.f32.xlu0 %v59
  %v61 = vpop.xlane.xlu0 %60
  %v62 = vsub.f32 %v58, %v18
  %v63 = vsub.f32 %v61, %v21
  %v64 = vsub.f32 %v62, %v35
  %v65 = vsub.f32 %v63, %v37
  %v66 = vadd.f32 %v18, %v35
  %v67 = vadd.f32 %v21, %v37
  %v68 = vmul.f32 %v66, 32.0
  %v69 = vmul.f32 %v67, 32.0
  %v70 = vsub.f32 %v40, %v68
  %v71 = vsub.f32 %v43, %v69
  %v72 = vmul.f32 %v64, -0.8967742
  %v73 = vmul.f32 %v65, -0.8967742
  %v74 = vmul.f32 %v70, 0.0032258064
  %v75 = vmul.f32 %v71, 0.0032258064
  %v76 = vsub.f32 %v72, %v74
  %v77 = vsub.f32 %v73, %v75
  %s78 = smul.u32 0, 16
  %v79 = vlaneseq
  %v80 = vshrl.u32 %v79, 7
  %v81 = vadd.s32 %v80, 8
  %v82 = vstv %s78
  %v83 = vadd.s32 %v82, %v80
  %v84 = vadd.s32 %v82, %v81
  %vm85 = vcmp.lt.s32.totalorder %v83, 10
  %vm86 = vcmp.lt.s32.totalorder %v84, 10
  %v87 = vsel %vm85, %v76, 0.0
  %v88 = vsel %vm86, %v77, 0.0
  %vm89 = vcmask 7168
  %90 = vst.msk [vmem:[%s2] sm:$0xff] %vm89, %v87
  %91 = vst.msk [vmem:[%s2 + $0x8] sm:$0xff] %vm89, %v88
  // Predicated region
  $region10: #{tpu_custom_call.1} parent=0 // pred_check
    _
  $region11: #{tpu_custom_call.1} parent=0 // pred_check_branch
    %93 = sbr.rel (0) target = $region13
  $region12: #{tpu_custom_call.1} parent=0 // pred_region
    _
  $region13: #{tpu_custom_call.1} parent=0 // pred_fallthru
    _
  // Predicated region
  $region14: #{tpu_custom_call.1} parent=0 // pred_check
    _
  $region15: #{tpu_custom_call.1} parent=0 // pred_check_branch
    %95 = sbr.rel (0) target = $region17
  $region16: #{tpu_custom_call.1} parent=0 // pred_region
    _
  $region17: #{tpu_custom_call.1} parent=0 // pred_fallthru
    _

</llo_original>
